<compile_context>
chip_gen: v5e
topology: v5e:2x2
jax: 0.10.0
libtpu: 0.0.40
codegen_flags: <defaults>
</compile_context>

<pallas_src>
import jax
import jax.numpy as jnp
from jax.experimental import pallas as pl
from jax.experimental.pallas import tpu as pltpu


LANE = 128  # TPU vreg lane width (fast axis); batch lives on this axis.


def mlp_kernel(x_ref, w1_ref, b1_ref, w2_ref, b2_ref, w3_ref, b3_ref, o_ref):
    # x_ref: (2, T) feature-major activation tile; T = batch tile on the lane axis.
    x = x_ref[...]

    # Layer 1: Linear(2, 16) + ReLU.
    # K=2 is far too shallow for the MXU systolic array, so use two VPU
    # broadcast multiply-adds instead of a matmul.
    h = (w1_ref[:, 0:1] * x[0:1, :]
         + w1_ref[:, 1:2] * x[1:2, :]
         + b1_ref[...])                                   # (16, T)
    h = jnp.maximum(h, 0.0)

    # Layer 2: Linear(16, 16) + ReLU  -> MXU, N = batch tile (the large dim).
    # HIGHEST precision matches the f32 reference; MXU is nowhere near the
    # bottleneck (HBM DMA is), so the extra passes are free.
    h = jnp.dot(w2_ref[...], h,
                preferred_element_type=jnp.float32,
                precision=jax.lax.Precision.HIGHEST) + b2_ref[...]
    h = jnp.maximum(h, 0.0)

    # Layer 3: Linear(16, 3) logits. Only 3 rows are computed and stored
    # (no 8-row padding -> 2.7x less output HBM traffic).
    out = jnp.dot(w3_ref[...], h,
                  preferred_element_type=jnp.float32,
                  precision=jax.lax.Precision.HIGHEST) + b3_ref[...]
    o_ref[...] = out.astype(o_ref.dtype)


def _tensorcores_per_chip():
    """Heuristic: chips with 2 TensorCores (v7x, megacore v3/v4/v5p)."""
    try:
        kind = jax.devices()[0].device_kind.lower()
    except Exception:
        return 1
    return 2 if any(t in kind for t in ("v7", "v5p", "v4", "v3")) else 1


def multi_class_classifier(x, params, *, batch_tile=32768, out_dtype=jnp.float32):
    """x: [B, 2] float32.  params: PyTorch-native layout (w: [out, in], b: [out])."""
    B, in_f = x.shape
    assert in_f == 2
    w1, b1 = params["w1"], params["b1"]   # (16, 2), (16,)
    w2, b2 = params["w2"], params["b2"]   # (16, 16), (16,)
    w3, b3 = params["w3"], params["b3"]   # (3, 16),  (3,)

    # ---- Tiling: round B to LANE, then pick a tile that divides the padding.
    lane_blocks = pl.cdiv(B, LANE)                        # B in 128-lane blocks
    tile_blocks = max(1, min(batch_tile // LANE, lane_blocks))
    steps = pl.cdiv(lane_blocks, tile_blocks)
    # Keep >= 2 parallel grid steps on multi-TC chips for large batches so both
    # TensorCores are used; no-op on single-TC chips or small B.
    if steps == 1 and B >= 32768 and _tensorcores_per_chip() >= 2:
        steps = 2
    tile_blocks = pl.cdiv(lane_blocks, steps)             # re-balance: overshoot < steps*LANE
    tile = tile_blocks * LANE
    padded_B = steps * tile
    grid = (steps,)

    # Feature-major: batch lives on the 128-lane axis. Fold the pad into the
    # transpose so only one XLA copy is materialized.
    if padded_B != B:
        xt = jnp.pad(x, ((0, padded_B - B), (0, 0))).T    # (2, padded_B)
    else:
        xt = x.T

    # Scoped VMEM: x(2 rows, double-buffered) + out(3 rows, double-buffered)
    # + ~4 live (16, tile) f32 intermediates, plus headroom. Raise above the
    # 16 MiB v5e default, cap at 64 MiB (v7x physical).
    vmem_need = tile * 4 * (2 * 2 + 3 * 2 + 16 * 4) + (2 << 20)
    vmem_limit = int(min(64 * 2**20, max(32 * 2**20, vmem_need)))

    # Advisory cost for XLA's scheduler.
    flops = 2 * B * (2 * 16 + 16 * 16 + 16 * 3)
    bytes_accessed = padded_B * 4 * (2 + 3) + 4 * (16 * 2 + 16 + 16 * 16 + 16 + 3 * 16 + 3)

    out = pl.pallas_call(
        mlp_kernel,
        out_shape=jax.ShapeDtypeStruct((3, padded_B), out_dtype),
        grid_spec=pltpu.PrefetchScalarGridSpec(
            num_scalar_prefetch=0,
            grid=grid,
            in_specs=[
                # activations: tiled along the batch/lane axis
                pl.BlockSpec((2, tile), lambda i: (0, i)),
                # parameters: full arrays, constant block index -> resident in
                # VMEM, DMA'd once (not re-fetched every grid step)
                pl.BlockSpec((16, 2), lambda i: (0, 0)),
                pl.BlockSpec((16, 1), lambda i: (0, 0)),
                pl.BlockSpec((16, 16), lambda i: (0, 0)),
                pl.BlockSpec((16, 1), lambda i: (0, 0)),
                pl.BlockSpec((3, 16), lambda i: (0, 0)),
                pl.BlockSpec((3, 1), lambda i: (0, 0)),
            ],
            out_specs=pl.BlockSpec((3, tile), lambda i: (0, i)),
        ),
        compiler_params=pltpu.CompilerParams(
            # batch axis is embarrassingly parallel -> shards across TensorCores
            # when the grid has >= 2 steps.
            dimension_semantics=("parallel",),
            vmem_limit_bytes=vmem_limit,
        ),
        cost_estimate=pl.CostEstimate(
            flops=flops, transcendentals=0, bytes_accessed=bytes_accessed),
    )(xt, w1, b1.reshape(16, 1), w2, b2.reshape(16, 1), w3, b3.reshape(3, 1))

    # Strip batch padding and return in the PyTorch [B, 3] convention.
    # TODO(synk): callers that can consume feature-major [3, B] logits should
    # take `out[:, :B]` directly and skip this transpose copy.
    return out[:, :B].T


def init_params(key):
    """Deterministic init mirroring nn.Linear default (PyTorch-native shapes)."""
    ks = jax.random.split(key, 6)

    def uniform(k, shape, fan_in):
        bound = 1.0 / jnp.sqrt(jnp.float32(fan_in))
        return jax.random.uniform(k, shape, jnp.float32, -bound, bound)

    return {
        "w1": uniform(ks[0], (16, 2), 2),
        "b1": uniform(ks[1], (16,), 2),
        "w2": uniform(ks[2], (16, 16), 16),
        "b2": uniform(ks[3], (16,), 16),
        "w3": uniform(ks[4], (3, 16), 16),
        "b3": uniform(ks[5], (3,), 16),
    }


def reference_forward(x, params):
    hp = jax.lax.Precision.HIGHEST
    h = jnp.maximum(jnp.dot(x, params["w1"].T, precision=hp) + params["b1"], 0.0)
    h = jnp.maximum(jnp.dot(h, params["w2"].T, precision=hp) + params["b2"], 0.0)
    return jnp.dot(h, params["w3"].T, precision=hp) + params["b3"]


if __name__ == "__main__":
    key = jax.random.PRNGKey(0)
    k_params, k_x1, k_x2, k_x3 = jax.random.split(key, 4)
    params = init_params(k_params)

    # Small shape consistent with the module: batch=8, features=2.
    x_small = jax.random.normal(k_x1, (8, 2), dtype=jnp.float32)
    out_small = jax.block_until_ready(multi_class_classifier(x_small, params))
    ref_small = reference_forward(x_small, params)
    assert out_small.shape == (8, 3), out_small.shape
    assert jnp.allclose(out_small, ref_small, atol=1e-5, rtol=1e-5), "mismatch (B=8)"

    # Multi-step pipelined batch grid + uneven padding path (3 steps of 128).
    x_mid = jax.random.normal(k_x2, (300, 2), dtype=jnp.float32)
    out_mid = jax.block_until_ready(
        multi_class_classifier(x_mid, params, batch_tile=128))
    ref_mid = reference_forward(x_mid, params)
    assert out_mid.shape == (300, 3), out_mid.shape
    assert jnp.allclose(out_mid, ref_mid, atol=1e-5, rtol=1e-5), "mismatch (B=300)"

    # Default large-tile path (single or dual step depending on chip).
    x_big = jax.random.normal(k_x3, (5000, 2), dtype=jnp.float32)
    out_big = jax.block_until_ready(multi_class_classifier(x_big, params))
    ref_big = reference_forward(x_big, params)
    assert out_big.shape == (5000, 3), out_big.shape
    assert jnp.allclose(out_big, ref_big, atol=1e-5, rtol=1e-5), "mismatch (B=5000)"

    print("KERNEL_OK")
</pallas_src>

<mosaic_0001>
module attributes {stable_mosaic.version = 11 : i64} {
  func.func @mlp_kernel(%arg0: i32, %arg1: memref<2x128xf32, #tpu.memory_space<vmem>>, %arg2: memref<16x2xf32, #tpu.memory_space<vmem>>, %arg3: memref<16x1xf32, #tpu.memory_space<vmem>>, %arg4: memref<16x16xf32, #tpu.memory_space<vmem>>, %arg5: memref<16x1xf32, #tpu.memory_space<vmem>>, %arg6: memref<3x16xf32, #tpu.memory_space<vmem>>, %arg7: memref<3x1xf32, #tpu.memory_space<vmem>>, %arg8: memref<3x128xf32, #tpu.memory_space<vmem>>) attributes {dimension_semantics = [#tpu.dimension_semantics<parallel>], iteration_bounds = array<i64: 1>, scalar_prefetch = 0 : i64, scratch_operands = 0 : i64, tpu.core_type = #tpu.core_type<tc>, window_params = [{transform_indices = @transform_0, window_bounds = array<i64: 2, 128>}, {pipeline_mode = #tpu.pipeline_mode<synchronous>, transform_indices = @transform_1, window_bounds = array<i64: 16, 2>}, {pipeline_mode = #tpu.pipeline_mode<synchronous>, transform_indices = @transform_2, window_bounds = array<i64: 16, 1>}, {pipeline_mode = #tpu.pipeline_mode<synchronous>, transform_indices = @transform_3, window_bounds = array<i64: 16, 16>}, {pipeline_mode = #tpu.pipeline_mode<synchronous>, transform_indices = @transform_4, window_bounds = array<i64: 16, 1>}, {pipeline_mode = #tpu.pipeline_mode<synchronous>, transform_indices = @transform_5, window_bounds = array<i64: 3, 16>}, {pipeline_mode = #tpu.pipeline_mode<synchronous>, transform_indices = @transform_6, window_bounds = array<i64: 3, 1>}, {transform_indices = @transform_7, window_bounds = array<i64: 3, 128>}]} {
    %c0 = arith.constant 0 : index
    %c0_0 = arith.constant 0 : index
    %0 = vector.load %arg1[%c0, %c0_0] : memref<2x128xf32, #tpu.memory_space<vmem>>, vector<2x128xf32>
    %c0_1 = arith.constant 0 : index
    %c0_2 = arith.constant 0 : index
    %1 = vector.load %arg2[%c0_1, %c0_2] : memref<16x2xf32, #tpu.memory_space<vmem>>, vector<16x1xf32>
    %2 = vector.extract_strided_slice %0 {offsets = [0, 0], sizes = [1, 128], strides = [1, 1]} : vector<2x128xf32> to vector<1x128xf32>
    %3 = vector.broadcast %1 : vector<16x1xf32> to vector<16x128xf32>
    %4 = vector.broadcast %2 : vector<1x128xf32> to vector<16x128xf32>
    %5 = arith.mulf %3, %4 : vector<16x128xf32>
    %c0_3 = arith.constant 0 : index
    %c1 = arith.constant 1 : index
    %6 = vector.load %arg2[%c0_3, %c1] : memref<16x2xf32, #tpu.memory_space<vmem>>, vector<16x1xf32>
    %7 = vector.extract_strided_slice %0 {offsets = [1, 0], sizes = [1, 128], strides = [1, 1]} : vector<2x128xf32> to vector<1x128xf32>
    %8 = vector.broadcast %6 : vector<16x1xf32> to vector<16x128xf32>
    %9 = vector.broadcast %7 : vector<1x128xf32> to vector<16x128xf32>
    %10 = arith.mulf %8, %9 : vector<16x128xf32>
    %11 = arith.addf %5, %10 : vector<16x128xf32>
    %c0_4 = arith.constant 0 : index
    %c0_5 = arith.constant 0 : index
    %12 = vector.load %arg3[%c0_4, %c0_5] : memref<16x1xf32, #tpu.memory_space<vmem>>, vector<16x1xf32>
    %13 = vector.broadcast %12 : vector<16x1xf32> to vector<16x128xf32>
    %14 = arith.addf %11, %13 : vector<16x128xf32>
    %cst = arith.constant 0.000000e+00 : f32
    %15 = vector.broadcast %cst : f32 to vector<16x128xf32>
    %16 = arith.maximumf %14, %15 : vector<16x128xf32>
    %c0_6 = arith.constant 0 : index
    %c0_7 = arith.constant 0 : index
    %17 = vector.load %arg4[%c0_6, %c0_7] : memref<16x16xf32, #tpu.memory_space<vmem>>, vector<16x16xf32>
    %cst_8 = arith.constant dense<0.000000e+00> : vector<16x128xf32>
    %18 = tpu.matmul %17, %16, %cst_8 {dimension_numbers = #tpu.dot_dimension_numbers<[1], [0], [0], [1], [0, 0, 1, 1], [], []>, precision = #tpu.contract_precision<fp32>} : vector<16x16xf32>, vector<16x128xf32>, vector<16x128xf32> -> vector<16x128xf32>
    %c0_9 = arith.constant 0 : index
    %c0_10 = arith.constant 0 : index
    %19 = vector.load %arg5[%c0_9, %c0_10] : memref<16x1xf32, #tpu.memory_space<vmem>>, vector<16x1xf32>
    %20 = vector.broadcast %19 : vector<16x1xf32> to vector<16x128xf32>
    %21 = arith.addf %18, %20 : vector<16x128xf32>
    %cst_11 = arith.constant 0.000000e+00 : f32
    %22 = vector.broadcast %cst_11 : f32 to vector<16x128xf32>
    %23 = arith.maximumf %21, %22 : vector<16x128xf32>
    %c0_12 = arith.constant 0 : index
    %c0_13 = arith.constant 0 : index
    %24 = vector.load %arg6[%c0_12, %c0_13] : memref<3x16xf32, #tpu.memory_space<vmem>>, vector<3x16xf32>
    %cst_14 = arith.constant dense<0.000000e+00> : vector<3x128xf32>
    %25 = tpu.matmul %24, %23, %cst_14 {dimension_numbers = #tpu.dot_dimension_numbers<[1], [0], [0], [1], [0, 0, 1, 1], [], []>, precision = #tpu.contract_precision<fp32>} : vector<3x16xf32>, vector<16x128xf32>, vector<3x128xf32> -> vector<3x128xf32>
    %c0_15 = arith.constant 0 : index
    %c0_16 = arith.constant 0 : index
    %26 = vector.load %arg7[%c0_15, %c0_16] : memref<3x1xf32, #tpu.memory_space<vmem>>, vector<3x1xf32>
    %27 = vector.broadcast %26 : vector<3x1xf32> to vector<3x128xf32>
    %28 = arith.addf %25, %27 : vector<3x128xf32>
    %c0_17 = arith.constant 0 : index
    %c0_18 = arith.constant 0 : index
    %29 = vector.load %arg8[%c0_17, %c0_18] : memref<3x128xf32, #tpu.memory_space<vmem>>, vector<3x128xf32>
    tpu.vector_store %arg8[%c0_17, %c0_18], %28 {strides = array<i32>} : memref<3x128xf32, #tpu.memory_space<vmem>>, vector<3x128xf32>,
    return
  }
  func.func @transform_0(%arg0: i32) -> (i32, i32) {
    %c0_i32 = arith.constant 0 : i32
    %c0_i32_0 = arith.constant 0 : i32
    return %c0_i32, %arg0 : i32, i32
  }
  func.func @transform_1(%arg0: i32) -> (i32, i32) {
    %c0_i32 = arith.constant 0 : i32
    %c0_i32_0 = arith.constant 0 : i32
    %c0_i32_1 = arith.constant 0 : i32
    return %c0_i32, %c0_i32_0 : i32, i32
  }
  func.func @transform_2(%arg0: i32) -> (i32, i32) {
    %c0_i32 = arith.constant 0 : i32
    %c0_i32_0 = arith.constant 0 : i32
    %c0_i32_1 = arith.constant 0 : i32
    return %c0_i32, %c0_i32_0 : i32, i32
  }
  func.func @transform_3(%arg0: i32) -> (i32, i32) {
    %c0_i32 = arith.constant 0 : i32
    %c0_i32_0 = arith.constant 0 : i32
    %c0_i32_1 = arith.constant 0 : i32
    return %c0_i32, %c0_i32_0 : i32, i32
  }
  func.func @transform_4(%arg0: i32) -> (i32, i32) {
    %c0_i32 = arith.constant 0 : i32
    %c0_i32_0 = arith.constant 0 : i32
    %c0_i32_1 = arith.constant 0 : i32
    return %c0_i32, %c0_i32_0 : i32, i32
  }
  func.func @transform_5(%arg0: i32) -> (i32, i32) {
    %c0_i32 = arith.constant 0 : i32
    %c0_i32_0 = arith.constant 0 : i32
    %c0_i32_1 = arith.constant 0 : i32
    return %c0_i32, %c0_i32_0 : i32, i32
  }
  func.func @transform_6(%arg0: i32) -> (i32, i32) {
    %c0_i32 = arith.constant 0 : i32
    %c0_i32_0 = arith.constant 0 : i32
    %c0_i32_1 = arith.constant 0 : i32
    return %c0_i32, %c0_i32_0 : i32, i32
  }
  func.func @transform_7(%arg0: i32) -> (i32, i32) {
    %c0_i32 = arith.constant 0 : i32
    %c0_i32_0 = arith.constant 0 : i32
    return %c0_i32, %arg0 : i32, i32
  }
}

</mosaic_0001>

<llo_original>
// kernel: tpu_custom_call.1
$region0: #{tpu_custom_call.1}
  #allocation0 [shape = 'u32[]', space=smem, size = 0x4, offset = 0x4, fixed_abs, tag = 'smem constant byte address 0x4 - core index']
  #allocation1 [shape = 'u32[72,128]{1,0:T(1,128)}', space=vmem, size = 0x9000, scoped, tag = 'internal scratch']
  %s0 = inlined_call_operand.vmem [shape: f32[2,128], index: 0, kind: input, shape index: {}]
  %s1 = inlined_call_operand.vmem [shape: f32[16,2], index: 1, kind: input, shape index: {}]
  %s2 = inlined_call_operand.vmem [shape: f32[16,1], index: 2, kind: input, shape index: {}]
  %s3 = inlined_call_operand.vmem [shape: f32[16,16], index: 3, kind: input, shape index: {}]
  %s4 = inlined_call_operand.vmem [shape: f32[16,1], index: 4, kind: input, shape index: {}]
  %s5 = inlined_call_operand.vmem [shape: f32[3,16], index: 5, kind: input, shape index: {}]
  %s6 = inlined_call_operand.vmem [shape: f32[3,1], index: 6, kind: input, shape index: {}]
  %s7 = inlined_call_operand.hbm [shape: f32[3,128], index: 7, kind: output, shape index: {}]
  %s8 = sld [smem:[#allocation0]]
  $region38: #{tpu_custom_call.1} parent=0
    _
  %s10 = ssub.s32 1, %s8
  %s11 = scalar_select 0, %s10, %s8
  $region1: #{tpu_custom_call.1} parent=0
    #allocation2 [shape = 'u8[2048]{0}', space=vmem, size = 0x800, scoped, tag = 'output window, operand 0, single buffered']
    #allocation3 [shape = 's32[1]{0}', space=sflag, size = 0x4, scoped, tag = 'scoped memory for tpu_custom_call.1']
    %12 = vsyncpa [#allocation3], 0
    // Predicated region
    $region2: #{tpu_custom_call.1} parent=1 // pred_check
      _
    $region3: #{tpu_custom_call.1} parent=1 // pred_check_branch
      %14 = sbr.rel (0) target = $region5
    $region4: #{tpu_custom_call.1} parent=1 // pred_region
      _
    $region5: #{tpu_custom_call.1} parent=1 // pred_fallthru
      _
    // Predicated region
    $region6: #{tpu_custom_call.1} parent=1 // pred_check
      _
    $region7: #{tpu_custom_call.1} parent=1 // pred_check_branch
      %16 = sbr.rel (0) target = $region9
    $region8: #{tpu_custom_call.1} parent=1 // pred_region
      _
    $region9: #{tpu_custom_call.1} parent=1 // pred_fallthru
      _
    // Predicated region
    $region10: #{tpu_custom_call.1} parent=1 // pred_check
      _
    $region11: #{tpu_custom_call.1} parent=1 // pred_check_branch
      %18 = sbr.rel (0) target = $region13
    $region12: #{tpu_custom_call.1} parent=1 // pred_region
      _
    $region13: #{tpu_custom_call.1} parent=1 // pred_fallthru
      _
    // Predicated region
    $region14: #{tpu_custom_call.1} parent=1 // pred_check
      _
    $region15: #{tpu_custom_call.1} parent=1 // pred_check_branch
      %20 = sbr.rel (0) target = $region17
    $region16: #{tpu_custom_call.1} parent=1 // pred_region
      _
    $region17: #{tpu_custom_call.1} parent=1 // pred_fallthru
      _
    // Predicated region
    $region18: #{tpu_custom_call.1} parent=1 // pred_check
      _
    $region19: #{tpu_custom_call.1} parent=1 // pred_check_branch
      %22 = sbr.rel (0) target = $region21
    $region20: #{tpu_custom_call.1} parent=1 // pred_region
      _
    $region21: #{tpu_custom_call.1} parent=1 // pred_fallthru
      _
    // Predicated region
    $region22: #{tpu_custom_call.1} parent=1 // pred_check
      _
    $region23: #{tpu_custom_call.1} parent=1 // pred_check_branch
      %24 = sbr.rel (0) target = $region25
    $region24: #{tpu_custom_call.1} parent=1 // pred_region
      _
    $region25: #{tpu_custom_call.1} parent=1 // pred_fallthru
      _
    // Predicated region
    $region26: #{tpu_custom_call.1} parent=1 // pred_check
      _
    $region27: #{tpu_custom_call.1} parent=1 // pred_check_branch
      %26 = sbr.rel (0) target = $region29
    $region28: #{tpu_custom_call.1} parent=1 // pred_region
      _
    $region29: #{tpu_custom_call.1} parent=1 // pred_fallthru
      _
    %v27 = vld [vmem:[%s0] sm:$0x3]
    %v28 = vld [vmem:[%s1] sm:$0xff]
    %v29 = vld [vmem:[%s1 + $0x8] sm:$0xff]
    %31 = vset.pattern.permute.xlu0 0
    %32 = vperm.xlu0 %31, %v28
    %v33 = vpop.permute.xlu0 %32
    %36 = vset.pattern.permute.xlu0 0
    %37 = vperm.xlu0 %36, %v29
    %v38 = vpop.permute.xlu0 %37
    %v40 = vperm.slane %v27, 0
    %v41 = vmul.f32 %v33, %v40
    %v42 = vmul.f32 %v38, %v40
    %43 = vset.pattern.permute.xlu0 1
    %44 = vperm.xlu0 %43, %v28
    %v45 = vpop.permute.xlu0 %44
    %47 = vset.pattern.permute.xlu0 1
    %48 = vperm.xlu0 %47, %v29
    %v49 = vpop.permute.xlu0 %48
    %v51 = vperm.slane %v27, 1
    %v52 = vmul.f32 %v45, %v51
    %v53 = vmul.f32 %v49, %v51
    %v54 = vadd.f32 %v41, %v52
    %v55 = vadd.f32 %v42, %v53
    %v56 = vld [vmem:[%s2] sm:$0xff]
    %v57 = vld [vmem:[%s2 + $0x8] sm:$0xff]
    %59 = vset.pattern.permute.xlu0 0
    %60 = vperm.xlu0 %59, %v56
    %v61 = vpop.permute.xlu0 %60
    %64 = vset.pattern.permute.xlu0 0
    %65 = vperm.xlu0 %64, %v57
    %v66 = vpop.permute.xlu0 %65
    %v68 = vadd.f32 %v54, %v61
    %v69 = vadd.f32 %v55, %v66
    %v70 = vmax.f32 %v68, 0.0
    %v71 = vmax.f32 %v69, 0.0
    %v72 = vld [vmem:[%s3] sm:$0xff]
    %v73 = vld [vmem:[%s3 + $0x8] sm:$0xff]
    %v74 = vld [vmem:[%s4] sm:$0xff]
    %v75 = vld [vmem:[%s4 + $0x8] sm:$0xff]
    %77 = vset.pattern.permute.xlu0 0
    %78 = vperm.xlu0 %77, %v74
    %v79 = vpop.permute.xlu0 %78
    %82 = vset.pattern.permute.xlu0 0
    %83 = vperm.xlu0 %82, %v75
    %v84 = vpop.permute.xlu0 %83
    %vm86 = vcmask 130048
    %v88 = vsel %vm86, %v72, 0
    %v91 = vsel %vm86, %v73, 0
    %93 = vmatpush.msra.mxu0 0.0
    %94 = vmatpush.msra.mxu0 0.0
    %95 = vmatpush.msra.mxu0 0.0
    %96 = vmatpush.msra.mxu0 0.0
    %97 = vmatpush.msra.mxu0 0.0
    %98 = vmatpush.msra.mxu0 0.0
    %99 = vmatpush.msra.mxu0 0.0
    %100 = vmatpush.msra.mxu0 0.0
    %101 = vmatpush.msra.mxu0 0.0
    %102 = vmatpush.msra.mxu0 0.0
    %103 = vmatpush.msra.mxu0 0.0
    %104 = vmatpush.msra.mxu0 0.0
    %105 = vmatpush.msra.mxu0 0.0
    %106 = vmatpush.msra.mxu0 0.0
    %v107 = vand.u32 %v71, 4294901760
    %108 = vmatpush.msra.mxu0 %v107
    %v109 = vand.u32 %v70, 4294901760
    %110 = vmatpush.msra.mxu0 %v109
    %v111 = vand.u32 %v88, 4294901760
    %v112 = vsub.f32 %v88, %v111
    %v113 = vand.u32 %v112, 4294901760
    %v114 = vsub.f32 %v112, %v113
    %v115 = vand.u32 %v114, 4294901760
    %116 = vmatmul.f32.gmra.mxu0 %v115
    %v117 = vpop.f32.mrf.mxu0
    %v118 = vadd.f32 %v79, %v117
    %v119 = vand.u32 %v91, 4294901760
    %v120 = vsub.f32 %v91, %v119
    %v121 = vand.u32 %v120, 4294901760
    %v122 = vsub.f32 %v120, %v121
    %v123 = vand.u32 %v122, 4294901760
    %124 = vmatmul.f32.gmra.mxu0 %v123
    %v125 = vpop.f32.mrf.mxu0
    %v126 = vadd.f32 %v84, %v125
    %127 = vdwg.mxu0
    %128 = vmatpush.msra.mxu0 0.0
    %129 = vmatpush.msra.mxu0 0.0
    %130 = vmatpush.msra.mxu0 0.0
    %131 = vmatpush.msra.mxu0 0.0
    %132 = vmatpush.msra.mxu0 0.0
    %133 = vmatpush.msra.mxu0 0.0
    %134 = vmatpush.msra.mxu0 0.0
    %135 = vmatpush.msra.mxu0 0.0
    %136 = vmatpush.msra.mxu0 0.0
    %137 = vmatpush.msra.mxu0 0.0
    %138 = vmatpush.msra.mxu0 0.0
    %139 = vmatpush.msra.mxu0 0.0
    %140 = vmatpush.msra.mxu0 0.0
    %141 = vmatpush.msra.mxu0 0.0
    %v142 = vand.u32 %v71, 4294901760
    %v143 = vsub.f32 %v71, %v142
    %v144 = vand.u32 %v143, 4294901760
    %v145 = vsub.f32 %v143, %v144
    %v146 = vand.u32 %v145, 4294901760
    %147 = vmatpush.msra.mxu0 %v146
    %v148 = vand.u32 %v70, 4294901760
    %v149 = vsub.f32 %v70, %v148
    %v150 = vand.u32 %v149, 4294901760
    %v151 = vsub.f32 %v149, %v150
    %v152 = vand.u32 %v151, 4294901760
    %153 = vmatpush.msra.mxu0 %v152
    %v154 = vand.u32 %v88, 4294901760
    %155 = vmatmul.f32.gmra.mxu0 %v154
    %v156 = vpop.f32.mrf.mxu0
    %v157 = vadd.f32 %v118, %v156
    %v158 = vand.u32 %v91, 4294901760
    %159 = vmatmul.f32.gmra.mxu0 %v158
    %v160 = vpop.f32.mrf.mxu0
    %v161 = vadd.f32 %v126, %v160
    %162 = vdwg.mxu0
    %163 = vmatpush.msra.mxu0 0.0
    %164 = vmatpush.msra.mxu0 0.0
    %165 = vmatpush.msra.mxu0 0.0
    %166 = vmatpush.msra.mxu0 0.0
    %167 = vmatpush.msra.mxu0 0.0
    %168 = vmatpush.msra.mxu0 0.0
    %169 = vmatpush.msra.mxu0 0.0
    %170 = vmatpush.msra.mxu0 0.0
    %171 = vmatpush.msra.mxu0 0.0
    %172 = vmatpush.msra.mxu0 0.0
    %173 = vmatpush.msra.mxu0 0.0
    %174 = vmatpush.msra.mxu0 0.0
    %175 = vmatpush.msra.mxu0 0.0
    %176 = vmatpush.msra.mxu0 0.0
    %v177 = vand.u32 %v71, 4294901760
    %v178 = vsub.f32 %v71, %v177
    %179 = vmatpush.msra.mxu0 %v178
    %v180 = vand.u32 %v70, 4294901760
    %v181 = vsub.f32 %v70, %v180
    %182 = vmatpush.msra.mxu0 %v181
    %v183 = vand.u32 %v88, 4294901760
    %v184 = vsub.f32 %v88, %v183
    %185 = vmatmul.f32.gmra.mxu0 %v184
    %v186 = vpop.f32.mrf.mxu0
    %v187 = vadd.f32 %v157, %v186
    %v188 = vand.u32 %v91, 4294901760
    %v189 = vsub.f32 %v91, %v188
    %190 = vmatmul.f32.gmra.mxu0 %v189
    %v191 = vpop.f32.mrf.mxu0
    %v192 = vadd.f32 %v161, %v191
    %193 = vdwg.mxu0
    %194 = vmatpush.msra.mxu0 0.0
    %195 = vmatpush.msra.mxu0 0.0
    %196 = vmatpush.msra.mxu0 0.0
    %197 = vmatpush.msra.mxu0 0.0
    %198 = vmatpush.msra.mxu0 0.0
    %199 = vmatpush.msra.mxu0 0.0
    %200 = vmatpush.msra.mxu0 0.0
    %201 = vmatpush.msra.mxu0 0.0
    %202 = vmatpush.msra.mxu0 0.0
    %203 = vmatpush.msra.mxu0 0.0
    %204 = vmatpush.msra.mxu0 0.0
    %205 = vmatpush.msra.mxu0 0.0
    %206 = vmatpush.msra.mxu0 0.0
    %207 = vmatpush.msra.mxu0 0.0
    %v208 = vand.u32 %v71, 4294901760
    %209 = vmatpush.msra.mxu0 %v208
    %v210 = vand.u32 %v70, 4294901760
    %211 = vmatpush.msra.mxu0 %v210
    %v212 = vand.u32 %v88, 4294901760
    %v213 = vsub.f32 %v88, %v212
    %v214 = vand.u32 %v213, 4294901760
    %215 = vmatmul.f32.gmra.mxu0 %v214
    %v216 = vpop.f32.mrf.mxu0
    %v217 = vadd.f32 %v187, %v216
    %v218 = vand.u32 %v91, 4294901760
    %v219 = vsub.f32 %v91, %v218
    %v220 = vand.u32 %v219, 4294901760
    %221 = vmatmul.f32.gmra.mxu0 %v220
    %v222 = vpop.f32.mrf.mxu0
    %v223 = vadd.f32 %v192, %v222
    %224 = vdwg.mxu0
    %225 = vmatpush.msra.mxu0 0.0
    %226 = vmatpush.msra.mxu0 0.0
    %227 = vmatpush.msra.mxu0 0.0
    %228 = vmatpush.msra.mxu0 0.0
    %229 = vmatpush.msra.mxu0 0.0
    %230 = vmatpush.msra.mxu0 0.0
    %231 = vmatpush.msra.mxu0 0.0
    %232 = vmatpush.msra.mxu0 0.0
    %233 = vmatpush.msra.mxu0 0.0
    %234 = vmatpush.msra.mxu0 0.0
    %235 = vmatpush.msra.mxu0 0.0
    %236 = vmatpush.msra.mxu0 0.0
    %237 = vmatpush.msra.mxu0 0.0
    %238 = vmatpush.msra.mxu0 0.0
    %v239 = vand.u32 %v71, 4294901760
    %v240 = vsub.f32 %v71, %v239
    %v241 = vand.u32 %v240, 4294901760
    %242 = vmatpush.msra.mxu0 %v241
    %v243 = vand.u32 %v70, 4294901760
    %v244 = vsub.f32 %v70, %v243
    %v245 = vand.u32 %v244, 4294901760
    %246 = vmatpush.msra.mxu0 %v245
    %v247 = vand.u32 %v88, 4294901760
    %248 = vmatmul.f32.gmra.mxu0 %v247
    %v249 = vpop.f32.mrf.mxu0
    %v250 = vadd.f32 %v217, %v249
    %v251 = vand.u32 %v91, 4294901760
    %252 = vmatmul.f32.gmra.mxu0 %v251
    %v253 = vpop.f32.mrf.mxu0
    %v254 = vadd.f32 %v223, %v253
    %255 = vdwg.mxu0
    %256 = vmatpush.msra.mxu0 0.0
    %257 = vmatpush.msra.mxu0 0.0
    %258 = vmatpush.msra.mxu0 0.0
    %259 = vmatpush.msra.mxu0 0.0
    %260 = vmatpush.msra.mxu0 0.0
    %261 = vmatpush.msra.mxu0 0.0
    %262 = vmatpush.msra.mxu0 0.0
    %263 = vmatpush.msra.mxu0 0.0
    %264 = vmatpush.msra.mxu0 0.0
    %265 = vmatpush.msra.mxu0 0.0
    %266 = vmatpush.msra.mxu0 0.0
    %267 = vmatpush.msra.mxu0 0.0
    %268 = vmatpush.msra.mxu0 0.0
    %269 = vmatpush.msra.mxu0 0.0
    %v270 = vand.u32 %v71, 4294901760
    %271 = vmatpush.msra.mxu0 %v270
    %v272 = vand.u32 %v70, 4294901760
    %273 = vmatpush.msra.mxu0 %v272
    %v274 = vand.u32 %v88, 4294901760
    %275 = vmatmul.f32.gmra.mxu0 %v274
    %v276 = vpop.f32.mrf.mxu0
    %v277 = vadd.f32 %v250, %v276
    %v278 = vand.u32 %v91, 4294901760
    %279 = vmatmul.f32.gmra.mxu0 %v278
    %v280 = vpop.f32.mrf.mxu0
    %v281 = vadd.f32 %v254, %v280
    %282 = vdwg.mxu0
    %v283 = vmax.f32 %v277, 0.0
    %v284 = vmax.f32 %v281, 0.0
    %v285 = vld [vmem:[%s5] sm:$0x7]
    %v286 = vld [vmem:[%s6] sm:$0x7]
    %288 = vset.pattern.permute.xlu0 0
    %289 = vperm.xlu0 %288, %v286
    %v290 = vpop.permute.xlu0 %289
    %v293 = vsel %vm86, %v285, 0
    %295 = vmatpush.msra.mxu0 0.0
    %296 = vmatpush.msra.mxu0 0.0
    %297 = vmatpush.msra.mxu0 0.0
    %298 = vmatpush.msra.mxu0 0.0
    %299 = vmatpush.msra.mxu0 0.0
    %300 = vmatpush.msra.mxu0 0.0
    %301 = vmatpush.msra.mxu0 0.0
    %302 = vmatpush.msra.mxu0 0.0
    %303 = vmatpush.msra.mxu0 0.0
    %304 = vmatpush.msra.mxu0 0.0
    %305 = vmatpush.msra.mxu0 0.0
    %306 = vmatpush.msra.mxu0 0.0
    %307 = vmatpush.msra.mxu0 0.0
    %308 = vmatpush.msra.mxu0 0.0
    %v309 = vand.u32 %v284, 4294901760
    %310 = vmatpush.msra.mxu0 %v309
    %v311 = vand.u32 %v283, 4294901760
    %312 = vmatpush.msra.mxu0 %v311
    %v313 = vand.u32 %v293, 4294901760
    %v314 = vsub.f32 %v293, %v313
    %v315 = vand.u32 %v314, 4294901760
    %v316 = vsub.f32 %v314, %v315
    %v317 = vand.u32 %v316, 4294901760
    %318 = vmatmul.f32.gmra.mxu0 %v317
    %v319 = vpop.f32.mrf.mxu0
    %v320 = vadd.f32 %v290, %v319
    %321 = vdwg.mxu0
    %322 = vmatpush.msra.mxu0 0.0
    %323 = vmatpush.msra.mxu0 0.0
    %324 = vmatpush.msra.mxu0 0.0
    %325 = vmatpush.msra.mxu0 0.0
    %326 = vmatpush.msra.mxu0 0.0
    %327 = vmatpush.msra.mxu0 0.0
    %328 = vmatpush.msra.mxu0 0.0
    %329 = vmatpush.msra.mxu0 0.0
    %330 = vmatpush.msra.mxu0 0.0
    %331 = vmatpush.msra.mxu0 0.0
    %332 = vmatpush.msra.mxu0 0.0
    %333 = vmatpush.msra.mxu0 0.0
    %334 = vmatpush.msra.mxu0 0.0
    %335 = vmatpush.msra.mxu0 0.0
    %v336 = vand.u32 %v284, 4294901760
    %v337 = vsub.f32 %v284, %v336
    %v338 = vand.u32 %v337, 4294901760
    %v339 = vsub.f32 %v337, %v338
    %v340 = vand.u32 %v339, 4294901760
    %341 = vmatpush.msra.mxu0 %v340
    %v342 = vand.u32 %v283, 4294901760
    %v343 = vsub.f32 %v283, %v342
    %v344 = vand.u32 %v343, 4294901760
    %v345 = vsub.f32 %v343, %v344
    %v346 = vand.u32 %v345, 4294901760
    %347 = vmatpush.msra.mxu0 %v346
    %v348 = vand.u32 %v293, 4294901760
    %349 = vmatmul.f32.gmra.mxu0 %v348
    %v350 = vpop.f32.mrf.mxu0
    %v351 = vadd.f32 %v320, %v350
    %352 = vdwg.mxu0
    %353 = vmatpush.msra.mxu0 0.0
    %354 = vmatpush.msra.mxu0 0.0
    %355 = vmatpush.msra.mxu0 0.0
    %356 = vmatpush.msra.mxu0 0.0
    %357 = vmatpush.msra.mxu0 0.0
    %358 = vmatpush.msra.mxu0 0.0
    %359 = vmatpush.msra.mxu0 0.0
    %360 = vmatpush.msra.mxu0 0.0
    %361 = vmatpush.msra.mxu0 0.0
    %362 = vmatpush.msra.mxu0 0.0
    %363 = vmatpush.msra.mxu0 0.0
    %364 = vmatpush.msra.mxu0 0.0
    %365 = vmatpush.msra.mxu0 0.0
    %366 = vmatpush.msra.mxu0 0.0
    %v367 = vand.u32 %v284, 4294901760
    %v368 = vsub.f32 %v284, %v367
    %369 = vmatpush.msra.mxu0 %v368
    %v370 = vand.u32 %v283, 4294901760
    %v371 = vsub.f32 %v283, %v370
    %372 = vmatpush.msra.mxu0 %v371
    %v373 = vand.u32 %v293, 4294901760
    %v374 = vsub.f32 %v293, %v373
    %375 = vmatmul.f32.gmra.mxu0 %v374
    %v376 = vpop.f32.mrf.mxu0
    %v377 = vadd.f32 %v351, %v376
    %378 = vdwg.mxu0
    %379 = vmatpush.msra.mxu0 0.0
    %380 = vmatpush.msra.mxu0 0.0
    %381 = vmatpush.msra.mxu0 0.0
    %382 = vmatpush.msra.mxu0 0.0
    %383 = vmatpush.msra.mxu0 0.0
    %384 = vmatpush.msra.mxu0 0.0
    %385 = vmatpush.msra.mxu0 0.0
    %386 = vmatpush.msra.mxu0 0.0
    %387 = vmatpush.msra.mxu0 0.0
    %388 = vmatpush.msra.mxu0 0.0
    %389 = vmatpush.msra.mxu0 0.0
    %390 = vmatpush.msra.mxu0 0.0
    %391 = vmatpush.msra.mxu0 0.0
    %392 = vmatpush.msra.mxu0 0.0
    %v393 = vand.u32 %v284, 4294901760
    %394 = vmatpush.msra.mxu0 %v393
    %v395 = vand.u32 %v283, 4294901760
    %396 = vmatpush.msra.mxu0 %v395
    %v397 = vand.u32 %v293, 4294901760
    %v398 = vsub.f32 %v293, %v397
    %v399 = vand.u32 %v398, 4294901760
    %400 = vmatmul.f32.gmra.mxu0 %v399
    %v401 = vpop.f32.mrf.mxu0
    %v402 = vadd.f32 %v377, %v401
    %403 = vdwg.mxu0
    %404 = vmatpush.msra.mxu0 0.0
    %405 = vmatpush.msra.mxu0 0.0
    %406 = vmatpush.msra.mxu0 0.0
    %407 = vmatpush.msra.mxu0 0.0
    %408 = vmatpush.msra.mxu0 0.0
    %409 = vmatpush.msra.mxu0 0.0
    %410 = vmatpush.msra.mxu0 0.0
    %411 = vmatpush.msra.mxu0 0.0
    %412 = vmatpush.msra.mxu0 0.0
    %413 = vmatpush.msra.mxu0 0.0
    %414 = vmatpush.msra.mxu0 0.0
    %415 = vmatpush.msra.mxu0 0.0
    %416 = vmatpush.msra.mxu0 0.0
    %417 = vmatpush.msra.mxu0 0.0
    %v418 = vand.u32 %v284, 4294901760
    %v419 = vsub.f32 %v284, %v418
    %v420 = vand.u32 %v419, 4294901760
    %421 = vmatpush.msra.mxu0 %v420
    %v422 = vand.u32 %v283, 4294901760
    %v423 = vsub.f32 %v283, %v422
    %v424 = vand.u32 %v423, 4294901760
    %425 = vmatpush.msra.mxu0 %v424
    %v426 = vand.u32 %v293, 4294901760
    %427 = vmatmul.f32.gmra.mxu0 %v426
    %v428 = vpop.f32.mrf.mxu0
    %v429 = vadd.f32 %v402, %v428
    %430 = vdwg.mxu0
    %431 = vmatpush.msra.mxu0 0.0
    %432 = vmatpush.msra.mxu0 0.0
    %433 = vmatpush.msra.mxu0 0.0
    %434 = vmatpush.msra.mxu0 0.0
    %435 = vmatpush.msra.mxu0 0.0
    %436 = vmatpush.msra.mxu0 0.0
    %437 = vmatpush.msra.mxu0 0.0
    %438 = vmatpush.msra.mxu0 0.0
    %439 = vmatpush.msra.mxu0 0.0
    %440 = vmatpush.msra.mxu0 0.0
    %441 = vmatpush.msra.mxu0 0.0
    %442 = vmatpush.msra.mxu0 0.0
    %443 = vmatpush.msra.mxu0 0.0
    %444 = vmatpush.msra.mxu0 0.0
    %v445 = vand.u32 %v284, 4294901760
    %446 = vmatpush.msra.mxu0 %v445
    %v447 = vand.u32 %v283, 4294901760
    %448 = vmatpush.msra.mxu0 %v447
    %v449 = vand.u32 %v293, 4294901760
    %450 = vmatmul.f32.gmra.mxu0 %v449
    %v451 = vpop.f32.mrf.mxu0
    %v452 = vadd.f32 %v429, %v451
    %453 = vdwg.mxu0
    %454 = vst [vmem:[#allocation2] sm:$0x7] %v452
    // Predicated region
    $region30: #{tpu_custom_call.1} parent=1 // pred_check
      _
    $region31: #{tpu_custom_call.1} parent=1 // pred_check_branch
      %456 = sbr.rel (0) target = $region33
    $region32: #{tpu_custom_call.1} parent=1 // pred_region
      %458 = vsyncadd [#allocation3], 0
      %s460 = sshll.u32 [#allocation2], 4
      %s461 = int_to_ptr.vmem [resolvable:$true] %s460
      %s462 = sshll.u32 %s7, 4
      %s463 = int_to_ptr.hbm [resolvable:$true] %s462
      %465 = dma.vmem_to_hbm [thread:$0]  %s461, 64, %s463, [#allocation3]
    $region33: #{tpu_custom_call.1} parent=1 // pred_fallthru
      _
    // Predicated region
    $region34: #{tpu_custom_call.1} parent=1 // pred_check
      _
    $region35: #{tpu_custom_call.1} parent=1 // pred_check_branch
      %467 = sbr.rel (0) target = $region37
    $region36: #{tpu_custom_call.1} parent=1 // pred_region
      %469 = dma.done [#allocation3], 64
    $region37: #{tpu_custom_call.1} parent=1 // pred_fallthru
      _
    %470 = vsyncpa [#allocation3], 1

</llo_original>
